<compile_context>
chip_gen: v7x
topology: tpu7x:2x2x1
jax: 0.10.0
libtpu: 0.0.40
codegen_flags: <defaults>
</compile_context>

<pallas_src>
import functools
import math

import jax
import jax.numpy as jnp
from jax.experimental import pallas as pl
from jax.experimental.pallas import tpu as pltpu

_LANE = 128
_SUBLANE = 8


def _round_up(x, m):
    return ((x + m - 1) // m) * m


def _lstm_decoder_kernel(xh_ref, c_ref, w_ref, wlin_ref, blin_ref,
                         out_ref, hn_ref, cn_ref, *, hp):
    """One LSTM step + Linear(H -> 1): one fused MXU matmul, VPU/EUP gate math."""
    # Fused gates: [x | h | 1 | 0] @ [[W_ih^T],[W_hh^T],[b_ih+b_hh],[0]] -> (Bp, 4*Hp),
    # f32 accumulation regardless of matmul input dtype.
    gates = jnp.dot(xh_ref[...], w_ref[...],
                    preferred_element_type=jnp.float32)

    # Each gate occupies exactly `hp` (multiple of 128) lanes -> whole-vreg slices.
    i_g = jax.nn.sigmoid(gates[:, 0 * hp:1 * hp])
    f_g = jax.nn.sigmoid(gates[:, 1 * hp:2 * hp])
    g_g = jnp.tanh(gates[:, 2 * hp:3 * hp])
    o_g = jax.nn.sigmoid(gates[:, 3 * hp:4 * hp])

    # State update kept in f32 (required for v5e VPU; cheap everywhere).
    c_new = f_g * c_ref[...] + i_g * g_g
    h_new = o_g * jnp.tanh(c_new)

    cn_ref[...] = c_new
    hn_ref[...] = h_new

    # Linear(H -> 1) as VPU broadcast-multiply + XLU lane reduction (+ SMEM bias).
    out_ref[...] = (jnp.sum(h_new * wlin_ref[...], axis=-1, keepdims=True)
                    + blin_ref[0])


def lstm_decoder_forward(x_input, encoder_hidden_states, params,
                         matmul_dtype=jnp.float32):
    """Wrapper mimicking lstm_decoder.forward.

    Args:
      x_input: (B, input_size) float32
      encoder_hidden_states: tuple (h0, c0), each (1, B, hidden_size)
      params: dict with PyTorch-shaped parameters (see init_params).
      matmul_dtype: dtype for the fused gate matmul inputs (use jnp.bfloat16 on
        v6e/v7x to halve weight DMA bytes; accumulation stays f32).

    Returns:
      (output, (h_n, c_n)) with shapes (B, 1, 1), ((1, B, H), (1, B, H)).
    """
    h0, c0 = encoder_hidden_states
    B, I = x_input.shape
    H = h0.shape[-1]

    Hp = _round_up(max(H, _LANE), _LANE)      # pad every gate to whole vregs
    Bp = _round_up(max(B, _SUBLANE), _SUBLANE)
    K_raw = I + Hp + 1                        # [x | h_pad | 1]
    Kp = _round_up(K_raw, _SUBLANE)           # sublane-aligned contraction dim

    f32 = jnp.float32
    wih = params["weight_ih_l0"].astype(f32)                          # (4H, I)
    whh = params["weight_hh_l0"].astype(f32)                          # (4H, H)
    bias = (params["bias_ih_l0"] + params["bias_hh_l0"]).astype(f32)  # (4H,)

    # Per-gate transposed weights with the output axis padded H -> Hp so the
    # fused (Kp, 4*Hp) weight slab has 128-lane-aligned gate columns.
    wih_g = jnp.pad(wih.reshape(4, H, I).transpose(0, 2, 1),
                    ((0, 0), (0, 0), (0, Hp - H)))                    # (4, I, Hp)
    whh_g = jnp.pad(whh.reshape(4, H, H).transpose(0, 2, 1),
                    ((0, 0), (0, Hp - H), (0, Hp - H)))               # (4, Hp, Hp)
    b_g = jnp.pad(bias.reshape(4, 1, H),
                  ((0, 0), (0, 0), (0, Hp - H)))                      # (4, 1, Hp)

    w_aug = jnp.concatenate([wih_g, whh_g, b_g], axis=1)              # (4, K_raw, Hp)
    w_aug = jnp.transpose(w_aug, (1, 0, 2)).reshape(K_raw, 4 * Hp)    # (K_raw, 4*Hp)
    w_aug = jnp.pad(w_aug, ((0, Kp - K_raw), (0, 0)))                 # (Kp, 4*Hp)

    h0_pad = jnp.pad(h0[0].astype(f32), ((0, 0), (0, Hp - H)))        # (B, Hp)
    xh = jnp.concatenate(
        [x_input.astype(f32), h0_pad, jnp.ones((B, 1), f32)], axis=-1)   # (B, K_raw)
    xh_aug = jnp.pad(xh, ((0, Bp - B), (0, Kp - K_raw)))              # (Bp, Kp)
    c0_pad = jnp.pad(c0[0].astype(f32),
                     ((0, Bp - B), (0, Hp - H)))                      # (Bp, Hp)

    wlin_row = jnp.pad(params["linear_weight"].astype(f32),
                       ((0, 0), (0, Hp - H)))                         # (1, Hp)
    blin = params["linear_bias"].astype(f32).reshape(1)               # (1,) -> SMEM

    # Optional reduced-precision MXU inputs (accumulation stays f32 in-kernel).
    xh_aug = xh_aug.astype(matmul_dtype)
    w_aug = w_aug.astype(matmul_dtype)

    full = lambda shape: pl.BlockSpec(shape, lambda: (0,) * len(shape))
    kernel = functools.partial(_lstm_decoder_kernel, hp=Hp)

    out, h_n, c_n = pl.pallas_call(
        kernel,
        out_shape=(
            jax.ShapeDtypeStruct((Bp, 1), f32),
            jax.ShapeDtypeStruct((Bp, Hp), f32),
            jax.ShapeDtypeStruct((Bp, Hp), f32),
        ),
        in_specs=[
            full((Bp, Kp)),                                      # [x | h | 1 | 0]
            full((Bp, Hp)),                                      # c0 (padded)
            full((Kp, 4 * Hp)),                                  # fused weights+bias
            full((1, Hp)),                                       # linear weight row
            pl.BlockSpec(memory_space=pltpu.MemorySpace.SMEM),   # linear bias scalar
        ],
        out_specs=(
            full((Bp, 1)),
            full((Bp, Hp)),
            full((Bp, Hp)),
        ),
        # Reuse the c0 buffer for c_n (in-place state update, no extra HBM alloc).
        input_output_aliases={1: 2},
    )(xh_aug, c0_pad, w_aug, wlin_row, blin)

    output = out[:B].reshape(B, 1, 1)                                 # (B, seq=1, 1)
    hidden = (h_n[:B, :H].reshape(1, B, H), c_n[:B, :H].reshape(1, B, H))
    return output, hidden


def init_params(key, input_size, hidden_size):
    """Deterministic init matching PyTorch LSTM/Linear parameter shapes."""
    k = 1.0 / math.sqrt(hidden_size)
    keys = jax.random.split(key, 6)
    u = lambda kk, shape, bound: jax.random.uniform(
        kk, shape, jnp.float32, minval=-bound, maxval=bound)
    return {
        "weight_ih_l0": u(keys[0], (4 * hidden_size, input_size), k),
        "weight_hh_l0": u(keys[1], (4 * hidden_size, hidden_size), k),
        "bias_ih_l0": u(keys[2], (4 * hidden_size,), k),
        "bias_hh_l0": u(keys[3], (4 * hidden_size,), k),
        "linear_weight": u(keys[4], (1, hidden_size), k),
        "linear_bias": u(keys[5], (1,), k),
    }


def _reference_forward(x_input, encoder_hidden_states, params):
    """Pure-JAX reference (mirrors PyTorch LSTM math) for the sanity check."""
    h0, c0 = encoder_hidden_states
    h, c = h0[0], c0[0]
    H = h.shape[-1]
    gates = (x_input @ params["weight_ih_l0"].T
             + h @ params["weight_hh_l0"].T
             + params["bias_ih_l0"] + params["bias_hh_l0"])
    i = jax.nn.sigmoid(gates[:, 0 * H:1 * H])
    f = jax.nn.sigmoid(gates[:, 1 * H:2 * H])
    g = jnp.tanh(gates[:, 2 * H:3 * H])
    o = jax.nn.sigmoid(gates[:, 3 * H:4 * H])
    c_new = f * c + i * g
    h_new = o * jnp.tanh(c_new)
    out = h_new @ params["linear_weight"].T + params["linear_bias"]
    B = x_input.shape[0]
    return out.reshape(B, 1, 1), (h_new[None], c_new[None])


if __name__ == "__main__":
    B, INPUT_SIZE, HIDDEN_SIZE = 8, 16, 32

    key = jax.random.PRNGKey(0)
    kp, kx, kh, kc = jax.random.split(key, 4)

    params = init_params(kp, INPUT_SIZE, HIDDEN_SIZE)
    x_input = jax.random.normal(kx, (B, INPUT_SIZE), jnp.float32)
    h0 = jax.random.normal(kh, (1, B, HIDDEN_SIZE), jnp.float32)
    c0 = jax.random.normal(kc, (1, B, HIDDEN_SIZE), jnp.float32)

    fwd = jax.jit(lstm_decoder_forward)
    output, (h_n, c_n) = fwd(x_input, (h0, c0), params)
    jax.block_until_ready((output, h_n, c_n))

    # Sanity check against pure-JAX reference (f32 path).
    ref_out, (ref_h, ref_c) = _reference_forward(x_input, (h0, c0), params)
    assert jnp.allclose(output, ref_out, atol=1e-5, rtol=1e-5)
    assert jnp.allclose(h_n, ref_h, atol=1e-5, rtol=1e-5)
    assert jnp.allclose(c_n, ref_c, atol=1e-5, rtol=1e-5)

    print("KERNEL_OK")
</pallas_src>

<mosaic_0001>
module attributes {stable_mosaic.version = 11 : i64} {
  func.func @_lstm_decoder_kernel(%arg0: memref<8x152xf32, #tpu.memory_space<vmem>>, %arg1: memref<8x128xf32, #tpu.memory_space<vmem>>, %arg2: memref<152x512xf32, #tpu.memory_space<vmem>>, %arg3: memref<1x128xf32, #tpu.memory_space<vmem>>, %arg4: memref<1xf32, #tpu.memory_space<smem>>, %arg5: memref<8x1xf32, #tpu.memory_space<vmem>>, %arg6: memref<8x128xf32, #tpu.memory_space<vmem>>, %arg7: memref<8x128xf32, #tpu.memory_space<vmem>>) attributes {dimension_semantics = [], scalar_prefetch = 0 : i64, scratch_operands = 0 : i64, tpu.core_type = #tpu.core_type<tc>} {
    %c0 = arith.constant 0 : index
    %c0_0 = arith.constant 0 : index
    %0 = vector.load %arg0[%c0, %c0_0] : memref<8x152xf32, #tpu.memory_space<vmem>>, vector<8x152xf32>
    %c0_1 = arith.constant 0 : index
    %c0_2 = arith.constant 0 : index
    %1 = vector.load %arg2[%c0_1, %c0_2] : memref<152x512xf32, #tpu.memory_space<vmem>>, vector<152x512xf32>
    %cst = arith.constant dense<0.000000e+00> : vector<8x512xf32>
    %2 = tpu.matmul %0, %1, %cst {dimension_numbers = #tpu.dot_dimension_numbers<[1], [0], [0], [1], [0, 0, 1, 1], [], []>} : vector<8x152xf32>, vector<152x512xf32>, vector<8x512xf32> -> vector<8x512xf32>
    %3 = vector.extract_strided_slice %2 {offsets = [0, 0], sizes = [8, 128], strides = [1, 1]} : vector<8x512xf32> to vector<8x128xf32>
    %4 = arith.negf %3 : vector<8x128xf32>
    %5 = math.exp %4 : vector<8x128xf32>
    %cst_3 = arith.constant 1.000000e+00 : f32
    %6 = vector.broadcast %cst_3 : f32 to vector<8x128xf32>
    %7 = arith.addf %6, %5 : vector<8x128xf32>
    %8 = arith.divf %6, %7 : vector<8x128xf32>
    %9 = vector.extract_strided_slice %2 {offsets = [0, 128], sizes = [8, 128], strides = [1, 1]} : vector<8x512xf32> to vector<8x128xf32>
    %10 = arith.negf %9 : vector<8x128xf32>
    %11 = math.exp %10 : vector<8x128xf32>
    %cst_4 = arith.constant 1.000000e+00 : f32
    %12 = vector.broadcast %cst_4 : f32 to vector<8x128xf32>
    %13 = arith.addf %12, %11 : vector<8x128xf32>
    %14 = arith.divf %12, %13 : vector<8x128xf32>
    %15 = vector.extract_strided_slice %2 {offsets = [0, 256], sizes = [8, 128], strides = [1, 1]} : vector<8x512xf32> to vector<8x128xf32>
    %16 = math.tanh %15 : vector<8x128xf32>
    %17 = vector.extract_strided_slice %2 {offsets = [0, 384], sizes = [8, 128], strides = [1, 1]} : vector<8x512xf32> to vector<8x128xf32>
    %18 = arith.negf %17 : vector<8x128xf32>
    %19 = math.exp %18 : vector<8x128xf32>
    %cst_5 = arith.constant 1.000000e+00 : f32
    %20 = vector.broadcast %cst_5 : f32 to vector<8x128xf32>
    %21 = arith.addf %20, %19 : vector<8x128xf32>
    %22 = arith.divf %20, %21 : vector<8x128xf32>
    %c0_6 = arith.constant 0 : index
    %c0_7 = arith.constant 0 : index
    %23 = vector.load %arg1[%c0_6, %c0_7] : memref<8x128xf32, #tpu.memory_space<vmem>>, vector<8x128xf32>
    %24 = arith.mulf %14, %23 : vector<8x128xf32>
    %25 = arith.mulf %8, %16 : vector<8x128xf32>
    %26 = arith.addf %24, %25 : vector<8x128xf32>
    %27 = math.tanh %26 : vector<8x128xf32>
    %28 = arith.mulf %22, %27 : vector<8x128xf32>
    %c0_8 = arith.constant 0 : index
    %c0_9 = arith.constant 0 : index
    %29 = vector.load %arg7[%c0_8, %c0_9] : memref<8x128xf32, #tpu.memory_space<vmem>>, vector<8x128xf32>
    tpu.vector_store %arg7[%c0_8, %c0_9], %26 {strides = array<i32>} : memref<8x128xf32, #tpu.memory_space<vmem>>, vector<8x128xf32>,
    %c0_10 = arith.constant 0 : index
    %c0_11 = arith.constant 0 : index
    %30 = vector.load %arg6[%c0_10, %c0_11] : memref<8x128xf32, #tpu.memory_space<vmem>>, vector<8x128xf32>
    tpu.vector_store %arg6[%c0_10, %c0_11], %28 {strides = array<i32>} : memref<8x128xf32, #tpu.memory_space<vmem>>, vector<8x128xf32>,
    %c0_12 = arith.constant 0 : index
    %c0_13 = arith.constant 0 : index
    %31 = vector.load %arg3[%c0_12, %c0_13] : memref<1x128xf32, #tpu.memory_space<vmem>>, vector<1x128xf32>
    %32 = vector.broadcast %31 : vector<1x128xf32> to vector<8x128xf32>
    %33 = arith.mulf %28, %32 : vector<8x128xf32>
    %cst_14 = arith.constant dense<0.000000e+00> : vector<8xf32>
    %34 = vector.multi_reduction <add>, %33, %cst_14 [1] : vector<8x128xf32> to vector<8xf32>
    %35 = vector.shape_cast %34 : vector<8xf32> to vector<8x1xf32>
    %c0_15 = arith.constant 0 : index
    %36 = memref.load %arg4[%c0_15] : memref<1xf32, #tpu.memory_space<smem>>
    %37 = vector.broadcast %36 : f32 to vector<8x1xf32>
    %38 = arith.addf %35, %37 : vector<8x1xf32>
    %c0_16 = arith.constant 0 : index
    %c0_17 = arith.constant 0 : index
    %39 = vector.load %arg5[%c0_16, %c0_17] : memref<8x1xf32, #tpu.memory_space<vmem>>, vector<8x1xf32>
    tpu.vector_store %arg5[%c0_16, %c0_17], %38 {strides = array<i32>} : memref<8x1xf32, #tpu.memory_space<vmem>>, vector<8x1xf32>,
    return
  }
}

</mosaic_0001>

<llo_original>
// kernel: lstm_decoder_forward.1
$region0: #{lstm_decoder_forward.1}
  #allocation0 [shape = 'u32[]', space=smem, size = 0x4, offset = 0x4, fixed_abs, tag = 'smem constant byte address 0x4 - core index']
  #allocation1 [shape = 'u32[144,128]{1,0:T(1,128)}', space=vmem, size = 0x12000, scoped, tag = 'internal scratch']
  #allocation2 [shape = 'f32[1]{0:T(128)S(6)}', space=smem, size = 0x200, scoped, tag = 'scoped memory for lstm_decoder_forward.1']
  %s0 = inlined_call_operand.vmem [shape: f32[8,152], index: 0, kind: input, shape index: {}]
  %s1 = inlined_call_operand.vmem [shape: f32[8,128], index: 1, kind: input, shape index: {}, may-alias: {1,7}]
  %s2 = inlined_call_operand.vmem [shape: f32[152,512], index: 2, kind: input, shape index: {}]
  %s3 = inlined_call_operand.vmem [shape: f32[1,128], index: 3, kind: input, shape index: {}]
  %s4 = inlined_call_operand.<no memory space> [shape: f32[1], index: 4, kind: input, shape index: {}]
  %s5 = inlined_call_operand.vmem [shape: f32[8,1], index: 5, kind: output, shape index: {0}]
  %s6 = inlined_call_operand.vmem [shape: f32[8,128], index: 6, kind: output, shape index: {1}]
  %s7 = inlined_call_operand.vmem [shape: f32[8,128], index: 7, kind: output, shape index: {2}, may-alias: {1,7}]
  %8 = xla_tuple %s5, %s6, %s7
  %s9 = sld [smem:[#allocation0]]
  $region46: #{lstm_decoder_forward.1} parent=0
    _
  %s11 = ssub.s32 1, %s9
  %s12 = scalar_select 0, %s11, %s9
  %13 = sst [smem:[#allocation2]] %s4
  // Predicated region
  $region2: #{lstm_decoder_forward.1} parent=0 // pred_check
    _
  $region3: #{lstm_decoder_forward.1} parent=0 // pred_check_branch
    %15 = sbr.rel (0) target = $region5
  $region4: #{lstm_decoder_forward.1} parent=0 // pred_region
    _
  $region5: #{lstm_decoder_forward.1} parent=0 // pred_fallthru
    _
  // Predicated region
  $region6: #{lstm_decoder_forward.1} parent=0 // pred_check
    _
  $region7: #{lstm_decoder_forward.1} parent=0 // pred_check_branch
    %17 = sbr.rel (0) target = $region9
  $region8: #{lstm_decoder_forward.1} parent=0 // pred_region
    _
  $region9: #{lstm_decoder_forward.1} parent=0 // pred_fallthru
    _
  // Predicated region
  $region10: #{lstm_decoder_forward.1} parent=0 // pred_check
    _
  $region11: #{lstm_decoder_forward.1} parent=0 // pred_check_branch
    %19 = sbr.rel (0) target = $region13
  $region12: #{lstm_decoder_forward.1} parent=0 // pred_region
    _
  $region13: #{lstm_decoder_forward.1} parent=0 // pred_fallthru
    _
  // Predicated region
  $region14: #{lstm_decoder_forward.1} parent=0 // pred_check
    _
  $region15: #{lstm_decoder_forward.1} parent=0 // pred_check_branch
    %21 = sbr.rel (0) target = $region17
  $region16: #{lstm_decoder_forward.1} parent=0 // pred_region
    _
  $region17: #{lstm_decoder_forward.1} parent=0 // pred_fallthru
    _
  // Predicated region
  $region18: #{lstm_decoder_forward.1} parent=0 // pred_check
    _
  $region19: #{lstm_decoder_forward.1} parent=0 // pred_check_branch
    %23 = sbr.rel (0) target = $region21
  $region20: #{lstm_decoder_forward.1} parent=0 // pred_region
    _
  $region21: #{lstm_decoder_forward.1} parent=0 // pred_fallthru
    _
  %v24 = vld [vmem:[%s0] sm:$0xff]
  %v25 = vld [vmem:[%s0 + $0x8] sm:$0xff]
  %v26 = vld [vmem:[%s2] sm:$0xff]
  %v27 = vld [vmem:[%s2 + $0x8] sm:$0xff]
  %v28 = vld [vmem:[%s2 + $0x10] sm:$0xff]
  %v29 = vld [vmem:[%s2 + $0x18] sm:$0xff]
  %v30 = vld [vmem:[%s2 + $0x20] sm:$0xff]
  %v31 = vld [vmem:[%s2 + $0x28] sm:$0xff]
  %v32 = vld [vmem:[%s2 + $0x30] sm:$0xff]
  %v33 = vld [vmem:[%s2 + $0x38] sm:$0xff]
  %v34 = vld [vmem:[%s2 + $0x40] sm:$0xff]
  %v35 = vld [vmem:[%s2 + $0x48] sm:$0xff]
  %v36 = vld [vmem:[%s2 + $0x50] sm:$0xff]
  %v37 = vld [vmem:[%s2 + $0x58] sm:$0xff]
  %v38 = vld [vmem:[%s2 + $0x60] sm:$0xff]
  %v39 = vld [vmem:[%s2 + $0x68] sm:$0xff]
  %v40 = vld [vmem:[%s2 + $0x70] sm:$0xff]
  %v41 = vld [vmem:[%s2 + $0x78] sm:$0xff]
  %v42 = vld [vmem:[%s2 + $0x80] sm:$0xff]
  %v43 = vld [vmem:[%s2 + $0x88] sm:$0xff]
  %v44 = vld [vmem:[%s2 + $0x90] sm:$0xff]
  %v45 = vld [vmem:[%s2 + $0x98] sm:$0xff]
  %v46 = vld [vmem:[%s2 + $0xa0] sm:$0xff]
  %v47 = vld [vmem:[%s2 + $0xa8] sm:$0xff]
  %v48 = vld [vmem:[%s2 + $0xb0] sm:$0xff]
  %v49 = vld [vmem:[%s2 + $0xb8] sm:$0xff]
  %v50 = vld [vmem:[%s2 + $0xc0] sm:$0xff]
  %v51 = vld [vmem:[%s2 + $0xc8] sm:$0xff]
  %v52 = vld [vmem:[%s2 + $0xd0] sm:$0xff]
  %v53 = vld [vmem:[%s2 + $0xd8] sm:$0xff]
  %v54 = vld [vmem:[%s2 + $0xe0] sm:$0xff]
  %v55 = vld [vmem:[%s2 + $0xe8] sm:$0xff]
  %v56 = vld [vmem:[%s2 + $0xf0] sm:$0xff]
  %v57 = vld [vmem:[%s2 + $0xf8] sm:$0xff]
  %v58 = vld [vmem:[%s2 + $0x100] sm:$0xff]
  %v59 = vld [vmem:[%s2 + $0x108] sm:$0xff]
  %v60 = vld [vmem:[%s2 + $0x110] sm:$0xff]
  %v61 = vld [vmem:[%s2 + $0x118] sm:$0xff]
  %v62 = vld [vmem:[%s2 + $0x120] sm:$0xff]
  %v63 = vld [vmem:[%s2 + $0x128] sm:$0xff]
  %v64 = vld [vmem:[%s2 + $0x130] sm:$0xff]
  %v65 = vld [vmem:[%s2 + $0x138] sm:$0xff]
  %v66 = vld [vmem:[%s2 + $0x140] sm:$0xff]
  %v67 = vld [vmem:[%s2 + $0x148] sm:$0xff]
  %v68 = vld [vmem:[%s2 + $0x150] sm:$0xff]
  %v69 = vld [vmem:[%s2 + $0x158] sm:$0xff]
  %v70 = vld [vmem:[%s2 + $0x160] sm:$0xff]
  %v71 = vld [vmem:[%s2 + $0x168] sm:$0xff]
  %v72 = vld [vmem:[%s2 + $0x170] sm:$0xff]
  %v73 = vld [vmem:[%s2 + $0x178] sm:$0xff]
  %v74 = vld [vmem:[%s2 + $0x180] sm:$0xff]
  %v75 = vld [vmem:[%s2 + $0x188] sm:$0xff]
  %v76 = vld [vmem:[%s2 + $0x190] sm:$0xff]
  %v77 = vld [vmem:[%s2 + $0x198] sm:$0xff]
  %v78 = vld [vmem:[%s2 + $0x1a0] sm:$0xff]
  %v79 = vld [vmem:[%s2 + $0x1a8] sm:$0xff]
  %v80 = vld [vmem:[%s2 + $0x1b0] sm:$0xff]
  %v81 = vld [vmem:[%s2 + $0x1b8] sm:$0xff]
  %v82 = vld [vmem:[%s2 + $0x1c0] sm:$0xff]
  %v83 = vld [vmem:[%s2 + $0x1c8] sm:$0xff]
  %v84 = vld [vmem:[%s2 + $0x1d0] sm:$0xff]
  %v85 = vld [vmem:[%s2 + $0x1d8] sm:$0xff]
  %v86 = vld [vmem:[%s2 + $0x1e0] sm:$0xff]
  %v87 = vld [vmem:[%s2 + $0x1e8] sm:$0xff]
  %v88 = vld [vmem:[%s2 + $0x1f0] sm:$0xff]
  %v89 = vld [vmem:[%s2 + $0x1f8] sm:$0xff]
  %v90 = vld [vmem:[%s2 + $0x200] sm:$0xff]
  %v91 = vld [vmem:[%s2 + $0x208] sm:$0xff]
  %v92 = vld [vmem:[%s2 + $0x210] sm:$0xff]
  %v93 = vld [vmem:[%s2 + $0x218] sm:$0xff]
  %v94 = vld [vmem:[%s2 + $0x220] sm:$0xff]
  %v95 = vld [vmem:[%s2 + $0x228] sm:$0xff]
  %v96 = vld [vmem:[%s2 + $0x230] sm:$0xff]
  %v97 = vld [vmem:[%s2 + $0x238] sm:$0xff]
  %v98 = vld [vmem:[%s2 + $0x240] sm:$0xff]
  %v99 = vld [vmem:[%s2 + $0x248] sm:$0xff]
  %v100 = vld [vmem:[%s2 + $0x250] sm:$0xff]
  %v101 = vld [vmem:[%s2 + $0x258] sm:$0xff]
  %vm102 = vcmask 195584
  %v104 = vsel %vm102, %v25, 0
  %106 = vmatprep.subr.mxu0 %v27
  %107 = vmatpush1.msra.mxu0 %v26
  %108 = vmatprep.subr.mxu0 %v31
  %109 = vmatpush1.msra.mxu0 %v30
  %110 = vmatprep.subr.mxu0 %v35
  %111 = vmatpush1.msra.mxu0 %v34
  %112 = vmatprep.subr.mxu0 %v39
  %113 = vmatpush1.msra.mxu0 %v38
  %114 = vmatprep.subr.mxu0 %v43
  %115 = vmatpush1.msra.mxu0 %v42
  %116 = vmatprep.subr.mxu0 %v47
  %117 = vmatpush1.msra.mxu0 %v46
  %118 = vmatprep.subr.mxu0 %v51
  %119 = vmatpush1.msra.mxu0 %v50
  %120 = vmatprep.subr.mxu0 %v55
  %121 = vmatpush1.msra.mxu0 %v54
  %122 = vmatprep.subr.mxu0 %v59
  %123 = vmatpush1.msra.mxu0 %v58
  %124 = vmatprep.subr.mxu0 %v63
  %125 = vmatpush1.msra.mxu0 %v62
  %126 = vmatprep.subr.mxu0 %v67
  %127 = vmatpush1.msra.mxu0 %v66
  %128 = vmatprep.subr.mxu0 %v71
  %129 = vmatpush1.msra.mxu0 %v70
  %130 = vmatprep.subr.mxu0 %v75
  %131 = vmatpush1.msra.mxu0 %v74
  %132 = vmatprep.subr.mxu0 %v79
  %133 = vmatpush1.msra.mxu0 %v78
  %134 = vmatprep.subr.mxu0 %v83
  %135 = vmatpush1.msra.mxu0 %v82
  %136 = vmatprep.subr.mxu0 %v87
  %137 = vmatpush1.msra.mxu0 %v86
  %138 = vmatprep.subr.mxu0 %v91
  %139 = vmatpush1.msra.mxu0 %v90
  %140 = vmatprep.subr.mxu0 %v95
  %141 = vmatpush1.msra.mxu0 %v94
  %142 = vmatprep.subr.mxu0 %v99
  %143 = vmatpush1.msra.mxu0 %v98
  %144 = vmatprep.subr.mxu0 0.0
  %145 = vmatpush1.msra.mxu0 0.0
  %146 = vmatprep.subr.mxu0 0.0
  %147 = vmatpush1.msra.mxu0 0.0
  %148 = vmatprep.subr.mxu0 0.0
  %149 = vmatpush1.msra.mxu0 0.0
  %150 = vmatprep.subr.mxu0 0.0
  %151 = vmatpush1.msra.mxu0 0.0
  %152 = vmatprep.subr.mxu0 0.0
  %153 = vmatpush1.msra.mxu0 0.0
  %154 = vmatprep.subr.mxu0 0.0
  %155 = vmatpush1.msra.mxu0 0.0
  %156 = vmatprep.subr.mxu0 0.0
  %157 = vmatpush1.msra.mxu0 0.0
  %158 = vmatprep.subr.mxu0 0.0
  %159 = vmatpush1.msra.mxu0 0.0
  %160 = vmatprep.subr.mxu0 0.0
  %161 = vmatpush1.msra.mxu0 0.0
  %162 = vmatprep.subr.mxu0 0.0
  %163 = vmatpush1.msra.mxu0 0.0
  %164 = vmatprep.subr.mxu0 0.0
  %165 = vmatpush1.msra.mxu0 0.0
  %166 = vmatprep.subr.mxu0 0.0
  %167 = vmatpush1.msra.mxu0 0.0
  %168 = vmatprep.subr.mxu0 0.0
  %169 = vmatpush1.msra.mxu0 0.0
  %170 = vmatprep.mubr.f32.mxu0 %v104
  %171 = vmatmul.mubr.f32.gmra.mrb[0].mxu0 %v24
  %v172 = vpop.f32.mrb[0].mxu0
  %v173 = vadd.f32 0.0, %v172
  %v174 = vpop.f32.mrb[0].mxu0
  %v175 = vadd.f32 0.0, %v174
  %176 = vdwg.mxu0
  %177 = vmatprep.subr.mxu0 %v29
  %178 = vmatpush1.msra.mxu0 %v28
  %179 = vmatprep.subr.mxu0 %v33
  %180 = vmatpush1.msra.mxu0 %v32
  %181 = vmatprep.subr.mxu0 %v37
  %182 = vmatpush1.msra.mxu0 %v36
  %183 = vmatprep.subr.mxu0 %v41
  %184 = vmatpush1.msra.mxu0 %v40
  %185 = vmatprep.subr.mxu0 %v45
  %186 = vmatpush1.msra.mxu0 %v44
  %187 = vmatprep.subr.mxu0 %v49
  %188 = vmatpush1.msra.mxu0 %v48
  %189 = vmatprep.subr.mxu0 %v53
  %190 = vmatpush1.msra.mxu0 %v52
  %191 = vmatprep.subr.mxu0 %v57
  %192 = vmatpush1.msra.mxu0 %v56
  %193 = vmatprep.subr.mxu0 %v61
  %194 = vmatpush1.msra.mxu0 %v60
  %195 = vmatprep.subr.mxu0 %v65
  %196 = vmatpush1.msra.mxu0 %v64
  %197 = vmatprep.subr.mxu0 %v69
  %198 = vmatpush1.msra.mxu0 %v68
  %199 = vmatprep.subr.mxu0 %v73
  %200 = vmatpush1.msra.mxu0 %v72
  %201 = vmatprep.subr.mxu0 %v77
  %202 = vmatpush1.msra.mxu0 %v76
  %203 = vmatprep.subr.mxu0 %v81
  %204 = vmatpush1.msra.mxu0 %v80
  %205 = vmatprep.subr.mxu0 %v85
  %206 = vmatpush1.msra.mxu0 %v84
  %207 = vmatprep.subr.mxu0 %v89
  %208 = vmatpush1.msra.mxu0 %v88
  %209 = vmatprep.subr.mxu0 %v93
  %210 = vmatpush1.msra.mxu0 %v92
  %211 = vmatprep.subr.mxu0 %v97
  %212 = vmatpush1.msra.mxu0 %v96
  %213 = vmatprep.subr.mxu0 %v101
  %214 = vmatpush1.msra.mxu0 %v100
  %215 = vmatprep.subr.mxu0 0.0
  %216 = vmatpush1.msra.mxu0 0.0
  %217 = vmatprep.subr.mxu0 0.0
  %218 = vmatpush1.msra.mxu0 0.0
  %219 = vmatprep.subr.mxu0 0.0
  %220 = vmatpush1.msra.mxu0 0.0
  %221 = vmatprep.subr.mxu0 0.0
  %222 = vmatpush1.msra.mxu0 0.0
  %223 = vmatprep.subr.mxu0 0.0
  %224 = vmatpush1.msra.mxu0 0.0
  %225 = vmatprep.subr.mxu0 0.0
  %226 = vmatpush1.msra.mxu0 0.0
  %227 = vmatprep.subr.mxu0 0.0
  %228 = vmatpush1.msra.mxu0 0.0
  %229 = vmatprep.subr.mxu0 0.0
  %230 = vmatpush1.msra.mxu0 0.0
  %231 = vmatprep.subr.mxu0 0.0
  %232 = vmatpush1.msra.mxu0 0.0
  %233 = vmatprep.subr.mxu0 0.0
  %234 = vmatpush1.msra.mxu0 0.0
  %235 = vmatprep.subr.mxu0 0.0
  %236 = vmatpush1.msra.mxu0 0.0
  %237 = vmatprep.subr.mxu0 0.0
  %238 = vmatpush1.msra.mxu0 0.0
  %239 = vmatprep.subr.mxu0 0.0
  %240 = vmatpush1.msra.mxu0 0.0
  %241 = vmatprep.mubr.f32.mxu0 %v104
  %242 = vmatmul.mubr.f32.gmra.mrb[0].mxu0 %v24
  %v243 = vpop.f32.mrb[0].mxu0
  %v244 = vadd.f32 0.0, %v243
  %v245 = vpop.f32.mrb[0].mxu0
  %v246 = vadd.f32 0.0, %v245
  %247 = vdwg.mxu0
  %v248 = vxor.u32 %v173, 2147483648
  %v249 = vmul.f32 %v248, 1.442695
  %v250 = vpow.pop %v249
  %v251 = vadd.f32 %v250, 1.0
  %v252 = vrcp.pop %v251
  %v253 = vmul.f32 1.0, %v252
  %v254 = vxor.u32 %v175, 2147483648
  %v255 = vmul.f32 %v254, 1.442695
  %v256 = vpow.pop %v255
  %v257 = vadd.f32 %v256, 1.0
  %v258 = vrcp.pop %v257
  %v259 = vmul.f32 1.0, %v258
  %v260 = vtanh.pop %v244
  %v261 = vxor.u32 %v246, 2147483648
  %v262 = vmul.f32 %v261, 1.442695
  %v263 = vpow.pop %v262
  %v264 = vadd.f32 %v263, 1.0
  %v265 = vrcp.pop %v264
  %v266 = vmul.f32 1.0, %v265
  %v267 = vld [vmem:[%s1] sm:$0xff]
  %v268 = vmul.f32 %v259, %v267
  %v269 = vmul.f32 %v253, %v260
  %v270 = vadd.f32 %v268, %v269
  %v271 = vtanh.pop %v270
  %v272 = vmul.f32 %v266, %v271
  %273 = vst [vmem:[%s7] sm:$0xff] %v270
  %274 = vst [vmem:[%s6] sm:$0xff] %v272
  %v275 = vld [vmem:[%s3] sm:$0x1]
  %v277 = vlaneseq
  %v278 = vshrl.u32 %v277, 7
  %v279 = vsub.s32 0, %v278
  %v280 = vrot.slane %v275, %v279
  %v282 = vmul.f32 %v272, %v280
  %283 = vadd.xlane.f32.xlu0 %v282
  %v284 = vpop.xlane.xlu0 %283
  %s285 = sld [smem:[#allocation2]]
  %v286 = vstv %s285
  %v287 = vadd.f32 %v284, %v286
  %vm288 = vcmask 7168
  %289 = vst.msk [vmem:[%s5] sm:$0xff] %vm288, %v287
  // Predicated region
  $region22: #{lstm_decoder_forward.1} parent=0 // pred_check
    _
  $region23: #{lstm_decoder_forward.1} parent=0 // pred_check_branch
    %291 = sbr.rel (0) target = $region25
  $region24: #{lstm_decoder_forward.1} parent=0 // pred_region
    _
  $region25: #{lstm_decoder_forward.1} parent=0 // pred_fallthru
    _
  // Predicated region
  $region26: #{lstm_decoder_forward.1} parent=0 // pred_check
    _
  $region27: #{lstm_decoder_forward.1} parent=0 // pred_check_branch
    %293 = sbr.rel (0) target = $region29
  $region28: #{lstm_decoder_forward.1} parent=0 // pred_region
    _
  $region29: #{lstm_decoder_forward.1} parent=0 // pred_fallthru
    _
  // Predicated region
  $region30: #{lstm_decoder_forward.1} parent=0 // pred_check
    _
  $region31: #{lstm_decoder_forward.1} parent=0 // pred_check_branch
    %295 = sbr.rel (0) target = $region33
  $region32: #{lstm_decoder_forward.1} parent=0 // pred_region
    _
  $region33: #{lstm_decoder_forward.1} parent=0 // pred_fallthru
    _
  // Predicated region
  $region34: #{lstm_decoder_forward.1} parent=0 // pred_check
    _
  $region35: #{lstm_decoder_forward.1} parent=0 // pred_check_branch
    %297 = sbr.rel (0) target = $region37
  $region36: #{lstm_decoder_forward.1} parent=0 // pred_region
    _
  $region37: #{lstm_decoder_forward.1} parent=0 // pred_fallthru
    _
  // Predicated region
  $region38: #{lstm_decoder_forward.1} parent=0 // pred_check
    _
  $region39: #{lstm_decoder_forward.1} parent=0 // pred_check_branch
    %299 = sbr.rel (0) target = $region41
  $region40: #{lstm_decoder_forward.1} parent=0 // pred_region
    _
  $region41: #{lstm_decoder_forward.1} parent=0 // pred_fallthru
    _
  // Predicated region
  $region42: #{lstm_decoder_forward.1} parent=0 // pred_check
    _
  $region43: #{lstm_decoder_forward.1} parent=0 // pred_check_branch
    %301 = sbr.rel (0) target = $region45
  $region44: #{lstm_decoder_forward.1} parent=0 // pred_region
    _
  $region45: #{lstm_decoder_forward.1} parent=0 // pred_fallthru
    _

</llo_original>
